<compile_context>
chip_gen: v6e
topology: v6e:2x2x1
jax: 0.10.0
libtpu: 0.0.40
codegen_flags: <defaults>
</compile_context>

<pallas_src>
import functools

import jax
import jax.numpy as jnp
from jax import lax
from jax.experimental import pallas as pl
from jax.experimental.pallas import tpu as pltpu

K_IN = 784
H1 = 128
H2 = 64
H2P = 128          # H2 lane-padded to full 128 lanes
OUT = 10

P1, P2 = 0.3, 0.2
KEEP1 = 1.0 / (1.0 - P1)
KEEP2 = 1.0 / (1.0 - P2)
THRESH1_INT = int(P1 * (2 ** 32))
THRESH2_INT = int(P2 * (2 ** 32))
SALT1 = 0x632BE59B
SALT2 = 0x9E3779B9
BN_EPS = 1e-5


# ----------------------------------------------------------------------------
# Shared math helpers (used by both the kernels and the pure-JAX reference)
# ----------------------------------------------------------------------------
def _random_u32(shape, seed_u32, row_off_u32):
    """Stateless per-element uint32 hash over (global_row, col, seed)."""
    r = lax.broadcasted_iota(jnp.int32, shape, 0).astype(jnp.uint32) + row_off_u32
    c = lax.broadcasted_iota(jnp.int32, shape, 1).astype(jnp.uint32)
    x = (r * jnp.uint32(0x9E3779B1)) ^ (c * jnp.uint32(0x85EBCA77)) ^ seed_u32
    x = x ^ (x >> 16)
    x = x * jnp.uint32(0x7FEB352D)
    x = x ^ (x >> 15)
    x = x * jnp.uint32(0x846CA68B)
    x = x ^ (x >> 16)
    return x


def _bn_relu_dropout(h, scale, shift, seed_u32, thresh_int, row_off_u32):
    """BN affine (dropout keep-scale pre-folded into scale/shift) -> ReLU ->
    dropout as a pure keep/zero select."""
    a = jnp.maximum(h * scale + shift, 0.0)
    bits = _random_u32(a.shape, seed_u32, row_off_u32)
    return jnp.where(bits >= jnp.uint32(thresh_int), a, 0.0)


def _bn_affine(col_sum, col_sumsq, n, gamma, beta, keep_scale, eps=BN_EPS):
    """Fold training-mode BatchNorm + inverted-dropout scale into one FMA."""
    mean = col_sum / n
    var = jnp.maximum(col_sumsq / n - mean * mean, 0.0)
    g_inv = gamma * lax.rsqrt(var + eps)
    scale = (g_inv * keep_scale).astype(jnp.float32).reshape(1, -1)
    shift = ((beta - mean * g_inv) * keep_scale).astype(jnp.float32).reshape(1, -1)
    return scale, shift


def _col_stats(h):
    """Pack per-block column sum (row 0) and sum-of-squares (row 1) into an
    (8, H) slab (sublane-aligned stats output block)."""
    s = jnp.sum(h, axis=0, keepdims=True)
    sq = jnp.sum(h * h, axis=0, keepdims=True)
    rows = lax.broadcasted_iota(jnp.int32, (8, h.shape[1]), 0)
    return jnp.where(rows == 0, s, jnp.where(rows == 1, sq, 0.0))


# ----------------------------------------------------------------------------
# Kernels (one per BN-bounded stage; batch grid axis, resident weights)
# ----------------------------------------------------------------------------
def _stage1_kernel(x_ref, w1_ref, h1_ref, st_ref):
    # Linear(784, 128) [bias cancelled by training-mode BN] + partial BN stats.
    h = jnp.dot(x_ref[...], w1_ref[...], preferred_element_type=jnp.float32)
    h1_ref[...] = h
    st_ref[...] = _col_stats(h)


def _stage2_kernel(seed_ref, h1_ref, sc_ref, sh_ref, w2_ref, h2_ref, st_ref):
    # BN1 + ReLU + dropout(0.3) -> Linear(128, 64->128) + partial BN stats.
    seed = seed_ref[0].astype(jnp.uint32) ^ jnp.uint32(SALT1)
    row_off = (pl.program_id(0) * h1_ref.shape[0]).astype(jnp.uint32)
    a = _bn_relu_dropout(h1_ref[...], sc_ref[...], sh_ref[...], seed,
                         THRESH1_INT, row_off)
    h = jnp.dot(a.astype(jnp.bfloat16), w2_ref[...],
                preferred_element_type=jnp.float32)
    h2_ref[...] = h
    st_ref[...] = _col_stats(h)


def _stage3_kernel(seed_ref, h2_ref, sc_ref, sh_ref, w3_ref, b3_ref, o_ref):
    # BN2 + ReLU + dropout(0.2) -> Linear(64->128, 10) + bias.
    seed = seed_ref[0].astype(jnp.uint32) ^ jnp.uint32(SALT2)
    row_off = (pl.program_id(0) * h2_ref.shape[0]).astype(jnp.uint32)
    a = _bn_relu_dropout(h2_ref[...], sc_ref[...], sh_ref[...], seed,
                         THRESH2_INT, row_off)
    o_ref[...] = (jnp.dot(a.astype(jnp.bfloat16), w3_ref[...],
                          preferred_element_type=jnp.float32) + b3_ref[...])


# ----------------------------------------------------------------------------
# Wrapper
# ----------------------------------------------------------------------------
def _pick_tb(batch, tb_max):
    if batch <= tb_max:
        return batch
    for tb in range(tb_max - tb_max % 8, 7, -8):
        if batch % tb == 0:
            return tb
    return batch  # fallback: single block (see TODO on ragged blocks)


@functools.partial(jax.jit, static_argnames=("tb_max",))
def ori_dnn_forward(seed, x, params, tb_max=1024):
    """Training-mode forward of ori_DNN.  seed: (1,) int32; x: (B, 784)."""
    (w1, g1, be1, w2, g2, be2, w3, b3) = params
    B = x.shape[0]
    TB = _pick_tb(B, tb_max)
    nb = B // TB

    x = x.astype(jnp.bfloat16)  # halve the dominant HBM stream
    parallel = pltpu.CompilerParams(dimension_semantics=("parallel",))

    # ---- Stage 1: h1 = x @ w1, per-block column sum / sumsq ---------------
    h1, st1 = pl.pallas_call(
        _stage1_kernel,
        out_shape=(jax.ShapeDtypeStruct((B, H1), jnp.float32),
                   jax.ShapeDtypeStruct((nb, 8, H1), jnp.float32)),
        grid_spec=pltpu.PrefetchScalarGridSpec(
            num_scalar_prefetch=0, grid=(nb,),
            in_specs=[pl.BlockSpec((TB, K_IN), lambda i: (i, 0)),
                      pl.BlockSpec((K_IN, H1), lambda i: (0, 0))],
            out_specs=[pl.BlockSpec((TB, H1), lambda i: (i, 0)),
                       pl.BlockSpec((None, 8, H1), lambda i: (i, 0, 0))]),
        compiler_params=parallel,
        cost_estimate=pl.CostEstimate(
            flops=2 * B * K_IN * H1, transcendentals=0,
            bytes_accessed=(B * K_IN * 2 + K_IN * H1 * 2
                            + B * H1 * 4 + nb * 8 * H1 * 4)),
    )(x, w1)

    sc1, sh1 = _bn_affine(jnp.sum(st1[:, 0, :], axis=0),
                          jnp.sum(st1[:, 1, :], axis=0), B, g1, be1, KEEP1)

    # ---- Stage 2: BN1/ReLU/drop -> h2 = a @ w2, per-block stats -----------
    h2, st2 = pl.pallas_call(
        _stage2_kernel,
        out_shape=(jax.ShapeDtypeStruct((B, H2P), jnp.float32),
                   jax.ShapeDtypeStruct((nb, 8, H2P), jnp.float32)),
        grid_spec=pltpu.PrefetchScalarGridSpec(
            num_scalar_prefetch=1, grid=(nb,),
            in_specs=[pl.BlockSpec((TB, H1), lambda i, s: (i, 0)),
                      pl.BlockSpec((1, H1), lambda i, s: (0, 0)),
                      pl.BlockSpec((1, H1), lambda i, s: (0, 0)),
                      pl.BlockSpec((H1, H2P), lambda i, s: (0, 0))],
            out_specs=[pl.BlockSpec((TB, H2P), lambda i, s: (i, 0)),
                       pl.BlockSpec((None, 8, H2P), lambda i, s: (i, 0, 0))]),
        compiler_params=parallel,
        cost_estimate=pl.CostEstimate(
            flops=2 * B * H1 * H2P, transcendentals=0,
            bytes_accessed=(B * H1 * 4 + 2 * H1 * 4 + H1 * H2P * 2
                            + B * H2P * 4 + nb * 8 * H2P * 4 + 4)),
    )(seed, h1, sc1, sh1, w2)

    sc2, sh2 = _bn_affine(jnp.sum(st2[:, 0, :], axis=0),
                          jnp.sum(st2[:, 1, :], axis=0), B, g2, be2, KEEP2)

    # ---- Stage 3: BN2/ReLU/drop -> out = a @ w3 + b3 -----------------------
    out = pl.pallas_call(
        _stage3_kernel,
        out_shape=jax.ShapeDtypeStruct((B, OUT), jnp.float32),
        grid_spec=pltpu.PrefetchScalarGridSpec(
            num_scalar_prefetch=1, grid=(nb,),
            in_specs=[pl.BlockSpec((TB, H2P), lambda i, s: (i, 0)),
                      pl.BlockSpec((1, H2P), lambda i, s: (0, 0)),
                      pl.BlockSpec((1, H2P), lambda i, s: (0, 0)),
                      pl.BlockSpec((H2P, OUT), lambda i, s: (0, 0)),
                      pl.BlockSpec((1, OUT), lambda i, s: (0, 0))],
            out_specs=pl.BlockSpec((TB, OUT), lambda i, s: (i, 0))),
        compiler_params=parallel,
        cost_estimate=pl.CostEstimate(
            flops=2 * B * H2P * OUT, transcendentals=0,
            bytes_accessed=(B * H2P * 4 + 2 * H2P * 4 + H2P * OUT * 2
                            + OUT * 4 + B * OUT * 4 + 4)),
    )(seed, h2, sc2, sh2, w3, b3)

    return out


# ----------------------------------------------------------------------------
# Pure-JAX reference (same math, no Pallas) for the self-check
# ----------------------------------------------------------------------------
def _ref_forward(seed, x, params):
    (w1, g1, be1, w2, g2, be2, w3, b3) = params
    B = x.shape[0]
    s_u32 = seed[0].astype(jnp.uint32)
    zero = jnp.uint32(0)

    h1 = jnp.dot(x.astype(jnp.bfloat16), w1, preferred_element_type=jnp.float32)
    sc1, sh1 = _bn_affine(h1.sum(0), (h1 * h1).sum(0), B, g1, be1, KEEP1)
    a = _bn_relu_dropout(h1, sc1, sh1, s_u32 ^ jnp.uint32(SALT1), THRESH1_INT, zero)

    h2 = jnp.dot(a.astype(jnp.bfloat16), w2, preferred_element_type=jnp.float32)
    sc2, sh2 = _bn_affine(h2.sum(0), (h2 * h2).sum(0), B, g2, be2, KEEP2)
    a = _bn_relu_dropout(h2, sc2, sh2, s_u32 ^ jnp.uint32(SALT2), THRESH2_INT, zero)

    return jnp.dot(a.astype(jnp.bfloat16), w3, preferred_element_type=jnp.float32) + b3


# ----------------------------------------------------------------------------
# Parameter init (matches the PyTorch module's init, bf16 weights, padding)
# ----------------------------------------------------------------------------
def init_params(key):
    """Kaiming-normal(fan_in, relu) weights, stored transposed (in, out) bf16.
    b1/b2 omitted (cancelled by training-mode BN); w2/w3/g2 zero-padded so the
    64-wide hidden layer is full-lane (128)."""
    ks = jax.random.split(key, 4)

    def kaiming(k, fan_in, fan_out):
        std = (2.0 / fan_in) ** 0.5
        return jax.random.normal(k, (fan_in, fan_out), jnp.float32) * std

    w1 = kaiming(ks[0], K_IN, H1).astype(jnp.bfloat16)                       # (784,128)
    w2 = jnp.pad(kaiming(ks[1], H1, H2), ((0, 0), (0, H2P - H2))).astype(jnp.bfloat16)  # (128,128)
    w3 = jnp.pad(kaiming(ks[2], H2, OUT), ((0, H2P - H2), (0, 0))).astype(jnp.bfloat16)  # (128,10)

    bound = 1.0 / (H2 ** 0.5)
    b3 = jax.random.uniform(ks[3], (1, OUT), jnp.float32, minval=-bound, maxval=bound)

    g1 = jnp.ones((H1,), jnp.float32)
    be1 = jnp.zeros((H1,), jnp.float32)
    g2 = jnp.pad(jnp.ones((H2,), jnp.float32), (0, H2P - H2))               # padded gamma = 0
    be2 = jnp.zeros((H2P,), jnp.float32)

    return (w1, g1, be1, w2, g2, be2, w3, b3)


if __name__ == "__main__":
    key = jax.random.PRNGKey(0)
    k_params, k_x, k_x2 = jax.random.split(key, 3)

    params = init_params(k_params)
    seed = jnp.array([1234], dtype=jnp.int32)

    # Small demo batch (single batch block). BatchNorm (training mode) needs B > 1.
    B = 8
    x = jax.random.normal(k_x, (B, K_IN), jnp.float32)
    out = jax.block_until_ready(ori_dnn_forward(seed, x, params))
    assert out.shape == (B, OUT) and out.dtype == jnp.float32
    assert bool(jnp.all(jnp.isfinite(out)))
    ref = _ref_forward(seed, x.astype(jnp.bfloat16), params)
    assert bool(jnp.allclose(out, ref, rtol=2e-2, atol=2e-2))

    # Multi-block path: exercises the batch grid + cross-block BatchNorm stats.
    B2 = 32
    x2 = jax.random.normal(k_x2, (B2, K_IN), jnp.float32)
    out2 = jax.block_until_ready(ori_dnn_forward(seed, x2, params, tb_max=8))
    assert out2.shape == (B2, OUT)
    assert bool(jnp.all(jnp.isfinite(out2)))
    ref2 = _ref_forward(seed, x2.astype(jnp.bfloat16), params)
    assert bool(jnp.allclose(out2, ref2, rtol=2e-2, atol=2e-2))

    print("KERNEL_OK")
</pallas_src>

<mosaic_0001>
module attributes {stable_mosaic.version = 11 : i64} {
  func.func @_stage1_kernel(%arg0: i32, %arg1: memref<8x784xbf16, #tpu.memory_space<vmem>>, %arg2: memref<784x128xbf16, #tpu.memory_space<vmem>>, %arg3: memref<8x128xf32, #tpu.memory_space<vmem>>, %arg4: memref<1x8x128xf32, #tpu.memory_space<vmem>>) attributes {dimension_semantics = [#tpu.dimension_semantics<parallel>], iteration_bounds = array<i64: 1>, scalar_prefetch = 0 : i64, scratch_operands = 0 : i64, tpu.core_type = #tpu.core_type<tc>, window_params = [{transform_indices = @transform_0, window_bounds = array<i64: 8, 784>}, {pipeline_mode = #tpu.pipeline_mode<synchronous>, transform_indices = @transform_1, window_bounds = array<i64: 784, 128>}, {transform_indices = @transform_2, window_bounds = array<i64: 8, 128>}, {transform_indices = @transform_3, window_bounds = array<i64: 1, 8, 128>}]} {
    %c0 = arith.constant 0 : index
    %c0_0 = arith.constant 0 : index
    %0 = vector.load %arg1[%c0, %c0_0] : memref<8x784xbf16, #tpu.memory_space<vmem>>, vector<8x784xbf16>
    %c0_1 = arith.constant 0 : index
    %c0_2 = arith.constant 0 : index
    %1 = vector.load %arg2[%c0_1, %c0_2] : memref<784x128xbf16, #tpu.memory_space<vmem>>, vector<784x128xbf16>
    %cst = arith.constant dense<0.000000e+00> : vector<8x128xf32>
    %2 = tpu.matmul %0, %1, %cst {dimension_numbers = #tpu.dot_dimension_numbers<[1], [0], [0], [1], [0, 0, 1, 1], [], []>} : vector<8x784xbf16>, vector<784x128xbf16>, vector<8x128xf32> -> vector<8x128xf32>
    %c0_3 = arith.constant 0 : index
    %c0_4 = arith.constant 0 : index
    %3 = vector.load %arg3[%c0_3, %c0_4] : memref<8x128xf32, #tpu.memory_space<vmem>>, vector<8x128xf32>
    tpu.vector_store %arg3[%c0_3, %c0_4], %2 {strides = array<i32>} : memref<8x128xf32, #tpu.memory_space<vmem>>, vector<8x128xf32>,
    %cst_5 = arith.constant dense<0.000000e+00> : vector<128xf32>
    %4 = vector.multi_reduction <add>, %2, %cst_5 [0] : vector<8x128xf32> to vector<128xf32>
    %5 = vector.shape_cast %4 : vector<128xf32> to vector<1x128xf32>
    %6 = arith.mulf %2, %2 : vector<8x128xf32>
    %cst_6 = arith.constant dense<0.000000e+00> : vector<128xf32>
    %7 = vector.multi_reduction <add>, %6, %cst_6 [0] : vector<8x128xf32> to vector<128xf32>
    %8 = vector.shape_cast %7 : vector<128xf32> to vector<1x128xf32>
    %9 = tpu.iota {dimensions = array<i32: 0>} : vector<8x128xi32>
    %c0_i32 = arith.constant 0 : i32
    %10 = vector.broadcast %c0_i32 : i32 to vector<8x128xi32>
    %11 = arith.cmpi eq, %9, %10 : vector<8x128xi32>
    %c1_i32 = arith.constant 1 : i32
    %12 = vector.broadcast %c1_i32 : i32 to vector<8x128xi32>
    %13 = arith.cmpi eq, %9, %12 : vector<8x128xi32>
    %cst_7 = arith.constant 0.000000e+00 : f32
    %14 = vector.shape_cast %8 : vector<1x128xf32> to vector<1x128xf32>
    %15 = vector.broadcast %14 : vector<1x128xf32> to vector<8x128xf32>
    %16 = vector.broadcast %cst_7 : f32 to vector<8x128xf32>
    %17 = arith.select %13, %15, %16 : vector<8x128xi1>, vector<8x128xf32>
    %18 = vector.shape_cast %5 : vector<1x128xf32> to vector<1x128xf32>
    %19 = vector.broadcast %18 : vector<1x128xf32> to vector<8x128xf32>
    %20 = arith.select %11, %19, %17 : vector<8x128xi1>, vector<8x128xf32>
    %c0_8 = arith.constant 0 : index
    %c0_9 = arith.constant 0 : index
    %c0_10 = arith.constant 0 : index
    %21 = vector.load %arg4[%c0_8, %c0_9, %c0_10] : memref<1x8x128xf32, #tpu.memory_space<vmem>>, vector<1x8x128xf32>
    %22 = vector.shape_cast %21 : vector<1x8x128xf32> to vector<8x128xf32>
    %23 = vector.shape_cast %20 : vector<8x128xf32> to vector<1x8x128xf32>
    tpu.vector_store %arg4[%c0_8, %c0_9, %c0_10], %23 {strides = array<i32>} : memref<1x8x128xf32, #tpu.memory_space<vmem>>, vector<1x8x128xf32>,
    return
  }
  func.func @transform_0(%arg0: i32) -> (i32, i32) {
    %c0_i32 = arith.constant 0 : i32
    %c0_i32_0 = arith.constant 0 : i32
    return %arg0, %c0_i32 : i32, i32
  }
  func.func @transform_1(%arg0: i32) -> (i32, i32) {
    %c0_i32 = arith.constant 0 : i32
    %c0_i32_0 = arith.constant 0 : i32
    %c0_i32_1 = arith.constant 0 : i32
    return %c0_i32, %c0_i32_0 : i32, i32
  }
  func.func @transform_2(%arg0: i32) -> (i32, i32) {
    %c0_i32 = arith.constant 0 : i32
    %c0_i32_0 = arith.constant 0 : i32
    return %arg0, %c0_i32 : i32, i32
  }
  func.func @transform_3(%arg0: i32) -> (i32, i32, i32) {
    %c0_i32 = arith.constant 0 : i32
    %c0_i32_0 = arith.constant 0 : i32
    %c0_i32_1 = arith.constant 0 : i32
    return %arg0, %c0_i32, %c0_i32_0 : i32, i32, i32
  }
}

module attributes {stable_mosaic.version = 11 : i64} {
  func.func @_stage3_kernel(%arg0: i32, %arg1: memref<1xi32, #tpu.memory_space<smem>>, %arg2: memref<8x128xf32, #tpu.memory_space<vmem>>, %arg3: memref<1x128xf32, #tpu.memory_space<vmem>>, %arg4: memref<1x128xf32, #tpu.memory_space<vmem>>, %arg5: memref<128x10xbf16, #tpu.memory_space<vmem>>, %arg6: memref<1x10xf32, #tpu.memory_space<vmem>>, %arg7: memref<8x10xf32, #tpu.memory_space<vmem>>) attributes {dimension_semantics = [#tpu.dimension_semantics<parallel>], iteration_bounds = array<i64: 1>, scalar_prefetch = 1 : i64, scratch_operands = 0 : i64, tpu.core_type = #tpu.core_type<tc>, window_params = [{transform_indices = @transform_0, window_bounds = array<i64: 8, 128>}, {pipeline_mode = #tpu.pipeline_mode<synchronous>, transform_indices = @transform_1, window_bounds = array<i64: 1, 128>}, {pipeline_mode = #tpu.pipeline_mode<synchronous>, transform_indices = @transform_2, window_bounds = array<i64: 1, 128>}, {pipeline_mode = #tpu.pipeline_mode<synchronous>, transform_indices = @transform_3, window_bounds = array<i64: 128, 10>}, {pipeline_mode = #tpu.pipeline_mode<synchronous>, transform_indices = @transform_4, window_bounds = array<i64: 1, 10>}, {transform_indices = @transform_5, window_bounds = array<i64: 8, 10>}]} {
    %c0 = arith.constant 0 : index
    %0 = memref.load %arg1[%c0] : memref<1xi32, #tpu.memory_space<smem>>
    %c-1640531527_i32 = arith.constant -1640531527 : i32
    %1 = arith.xori %0, %c-1640531527_i32 : i32
    %c8_i32 = arith.constant 8 : i32
    %2 = arith.muli %arg0, %c8_i32 : i32
    %c0_0 = arith.constant 0 : index
    %c0_1 = arith.constant 0 : index
    %3 = vector.load %arg2[%c0_0, %c0_1] : memref<8x128xf32, #tpu.memory_space<vmem>>, vector<8x128xf32>
    %c0_2 = arith.constant 0 : index
    %c0_3 = arith.constant 0 : index
    %4 = vector.load %arg3[%c0_2, %c0_3] : memref<1x128xf32, #tpu.memory_space<vmem>>, vector<1x128xf32>
    %c0_4 = arith.constant 0 : index
    %c0_5 = arith.constant 0 : index
    %5 = vector.load %arg4[%c0_4, %c0_5] : memref<1x128xf32, #tpu.memory_space<vmem>>, vector<1x128xf32>
    %6 = vector.broadcast %4 : vector<1x128xf32> to vector<8x128xf32>
    %7 = arith.mulf %3, %6 : vector<8x128xf32>
    %8 = vector.broadcast %5 : vector<1x128xf32> to vector<8x128xf32>
    %9 = arith.addf %7, %8 : vector<8x128xf32>
    %cst = arith.constant 0.000000e+00 : f32
    %10 = vector.broadcast %cst : f32 to vector<8x128xf32>
    %11 = arith.maximumf %9, %10 : vector<8x128xf32>
    %12 = tpu.iota {dimensions = array<i32: 0>} : vector<8x128xi32>
    %13 = vector.broadcast %2 : i32 to vector<8x128xi32>
    %14 = arith.addi %12, %13 : vector<8x128xi32>
    %15 = tpu.iota {dimensions = array<i32: 1>} : vector<8x128xi32>
    %c-1640531535_i32 = arith.constant -1640531535 : i32
    %16 = vector.broadcast %c-1640531535_i32 : i32 to vector<8x128xi32>
    %17 = arith.muli %14, %16 : vector<8x128xi32>
    %c-2048144777_i32 = arith.constant -2048144777 : i32
    %18 = vector.broadcast %c-2048144777_i32 : i32 to vector<8x128xi32>
    %19 = arith.muli %15, %18 : vector<8x128xi32>
    %20 = arith.xori %17, %19 : vector<8x128xi32>
    %21 = vector.broadcast %1 : i32 to vector<8x128xi32>
    %22 = arith.xori %20, %21 : vector<8x128xi32>
    %c16_i32 = arith.constant 16 : i32
    %23 = vector.broadcast %c16_i32 : i32 to vector<8x128xi32>
    %24 = arith.shrui %22, %23 : vector<8x128xi32>
    %25 = arith.xori %22, %24 : vector<8x128xi32>
    %c2146121005_i32 = arith.constant 2146121005 : i32
    %26 = vector.broadcast %c2146121005_i32 : i32 to vector<8x128xi32>
    %27 = arith.muli %25, %26 : vector<8x128xi32>
    %c15_i32 = arith.constant 15 : i32
    %28 = vector.broadcast %c15_i32 : i32 to vector<8x128xi32>
    %29 = arith.shrui %27, %28 : vector<8x128xi32>
    %30 = arith.xori %27, %29 : vector<8x128xi32>
    %c-2073254261_i32 = arith.constant -2073254261 : i32
    %31 = vector.broadcast %c-2073254261_i32 : i32 to vector<8x128xi32>
    %32 = arith.muli %30, %31 : vector<8x128xi32>
    %c16_i32_6 = arith.constant 16 : i32
    %33 = vector.broadcast %c16_i32_6 : i32 to vector<8x128xi32>
    %34 = arith.shrui %32, %33 : vector<8x128xi32>
    %35 = arith.xori %32, %34 : vector<8x128xi32>
    %c858993459_i32 = arith.constant 858993459 : i32
    %36 = vector.broadcast %c858993459_i32 : i32 to vector<8x128xi32>
    %37 = arith.cmpi uge, %35, %36 : vector<8x128xi32>
    %cst_7 = arith.constant 0.000000e+00 : f32
    %38 = vector.broadcast %cst_7 : f32 to vector<8x128xf32>
    %39 = arith.select %37, %11, %38 : vector<8x128xi1>, vector<8x128xf32>
    %40 = arith.truncf %39 : vector<8x128xf32> to vector<8x128xbf16>
    %c0_8 = arith.constant 0 : index
    %c0_9 = arith.constant 0 : index
    %41 = vector.load %arg5[%c0_8, %c0_9] : memref<128x10xbf16, #tpu.memory_space<vmem>>, vector<128x10xbf16>
    %cst_10 = arith.constant dense<0.000000e+00> : vector<8x10xf32>
    %42 = tpu.matmul %40, %41, %cst_10 {dimension_numbers = #tpu.dot_dimension_numbers<[1], [0], [0], [1], [0, 0, 1, 1], [], []>} : vector<8x128xbf16>, vector<128x10xbf16>, vector<8x10xf32> -> vector<8x10xf32>
    %c0_11 = arith.constant 0 : index
    %c0_12 = arith.constant 0 : index
    %43 = vector.load %arg6[%c0_11, %c0_12] : memref<1x10xf32, #tpu.memory_space<vmem>>, vector<1x10xf32>
    %44 = vector.broadcast %43 : vector<1x10xf32> to vector<8x10xf32>
    %45 = arith.addf %42, %44 : vector<8x10xf32>
    %c0_13 = arith.constant 0 : index
    %c0_14 = arith.constant 0 : index
    %46 = vector.load %arg7[%c0_13, %c0_14] : memref<8x10xf32, #tpu.memory_space<vmem>>, vector<8x10xf32>
    tpu.vector_store %arg7[%c0_13, %c0_14], %45 {strides = array<i32>} : memref<8x10xf32, #tpu.memory_space<vmem>>, vector<8x10xf32>,
    return
  }
  func.func @transform_0(%arg0: i32, %arg1: memref<1xi32, #tpu.memory_space<smem>>) -> (i32, i32) {
    %c0_i32 = arith.constant 0 : i32
    %c0_i32_0 = arith.constant 0 : i32
    return %arg0, %c0_i32 : i32, i32
  }
  func.func @transform_1(%arg0: i32, %arg1: memref<1xi32, #tpu.memory_space<smem>>) -> (i32, i32) {
    %c0_i32 = arith.constant 0 : i32
    %c0_i32_0 = arith.constant 0 : i32
    %c0_i32_1 = arith.constant 0 : i32
    return %c0_i32, %c0_i32_0 : i32, i32
  }
  func.func @transform_2(%arg0: i32, %arg1: memref<1xi32, #tpu.memory_space<smem>>) -> (i32, i32) {
    %c0_i32 = arith.constant 0 : i32
    %c0_i32_0 = arith.constant 0 : i32
    %c0_i32_1 = arith.constant 0 : i32
    return %c0_i32, %c0_i32_0 : i32, i32
  }
  func.func @transform_3(%arg0: i32, %arg1: memref<1xi32, #tpu.memory_space<smem>>) -> (i32, i32) {
    %c0_i32 = arith.constant 0 : i32
    %c0_i32_0 = arith.constant 0 : i32
    %c0_i32_1 = arith.constant 0 : i32
    return %c0_i32, %c0_i32_0 : i32, i32
  }
  func.func @transform_4(%arg0: i32, %arg1: memref<1xi32, #tpu.memory_space<smem>>) -> (i32, i32) {
    %c0_i32 = arith.constant 0 : i32
    %c0_i32_0 = arith.constant 0 : i32
    %c0_i32_1 = arith.constant 0 : i32
    return %c0_i32, %c0_i32_0 : i32, i32
  }
  func.func @transform_5(%arg0: i32, %arg1: memref<1xi32, #tpu.memory_space<smem>>) -> (i32, i32) {
    %c0_i32 = arith.constant 0 : i32
    %c0_i32_0 = arith.constant 0 : i32
    return %arg0, %c0_i32 : i32, i32
  }
}

module attributes {stable_mosaic.version = 11 : i64} {
  func.func @_stage2_kernel(%arg0: i32, %arg1: memref<1xi32, #tpu.memory_space<smem>>, %arg2: memref<8x128xf32, #tpu.memory_space<vmem>>, %arg3: memref<1x128xf32, #tpu.memory_space<vmem>>, %arg4: memref<1x128xf32, #tpu.memory_space<vmem>>, %arg5: memref<128x128xbf16, #tpu.memory_space<vmem>>, %arg6: memref<8x128xf32, #tpu.memory_space<vmem>>, %arg7: memref<1x8x128xf32, #tpu.memory_space<vmem>>) attributes {dimension_semantics = [#tpu.dimension_semantics<parallel>], iteration_bounds = array<i64: 1>, scalar_prefetch = 1 : i64, scratch_operands = 0 : i64, tpu.core_type = #tpu.core_type<tc>, window_params = [{transform_indices = @transform_0, window_bounds = array<i64: 8, 128>}, {pipeline_mode = #tpu.pipeline_mode<synchronous>, transform_indices = @transform_1, window_bounds = array<i64: 1, 128>}, {pipeline_mode = #tpu.pipeline_mode<synchronous>, transform_indices = @transform_2, window_bounds = array<i64: 1, 128>}, {pipeline_mode = #tpu.pipeline_mode<synchronous>, transform_indices = @transform_3, window_bounds = array<i64: 128, 128>}, {transform_indices = @transform_4, window_bounds = array<i64: 8, 128>}, {transform_indices = @transform_5, window_bounds = array<i64: 1, 8, 128>}]} {
    %c0 = arith.constant 0 : index
    %0 = memref.load %arg1[%c0] : memref<1xi32, #tpu.memory_space<smem>>
    %c1663821211_i32 = arith.constant 1663821211 : i32
    %1 = arith.xori %0, %c1663821211_i32 : i32
    %c8_i32 = arith.constant 8 : i32
    %2 = arith.muli %arg0, %c8_i32 : i32
    %c0_0 = arith.constant 0 : index
    %c0_1 = arith.constant 0 : index
    %3 = vector.load %arg2[%c0_0, %c0_1] : memref<8x128xf32, #tpu.memory_space<vmem>>, vector<8x128xf32>
    %c0_2 = arith.constant 0 : index
    %c0_3 = arith.constant 0 : index
    %4 = vector.load %arg3[%c0_2, %c0_3] : memref<1x128xf32, #tpu.memory_space<vmem>>, vector<1x128xf32>
    %c0_4 = arith.constant 0 : index
    %c0_5 = arith.constant 0 : index
    %5 = vector.load %arg4[%c0_4, %c0_5] : memref<1x128xf32, #tpu.memory_space<vmem>>, vector<1x128xf32>
    %6 = vector.broadcast %4 : vector<1x128xf32> to vector<8x128xf32>
    %7 = arith.mulf %3, %6 : vector<8x128xf32>
    %8 = vector.broadcast %5 : vector<1x128xf32> to vector<8x128xf32>
    %9 = arith.addf %7, %8 : vector<8x128xf32>
    %cst = arith.constant 0.000000e+00 : f32
    %10 = vector.broadcast %cst : f32 to vector<8x128xf32>
    %11 = arith.maximumf %9, %10 : vector<8x128xf32>
    %12 = tpu.iota {dimensions = array<i32: 0>} : vector<8x128xi32>
    %13 = vector.broadcast %2 : i32 to vector<8x128xi32>
    %14 = arith.addi %12, %13 : vector<8x128xi32>
    %15 = tpu.iota {dimensions = array<i32: 1>} : vector<8x128xi32>
    %c-1640531535_i32 = arith.constant -1640531535 : i32
    %16 = vector.broadcast %c-1640531535_i32 : i32 to vector<8x128xi32>
    %17 = arith.muli %14, %16 : vector<8x128xi32>
    %c-2048144777_i32 = arith.constant -2048144777 : i32
    %18 = vector.broadcast %c-2048144777_i32 : i32 to vector<8x128xi32>
    %19 = arith.muli %15, %18 : vector<8x128xi32>
    %20 = arith.xori %17, %19 : vector<8x128xi32>
    %21 = vector.broadcast %1 : i32 to vector<8x128xi32>
    %22 = arith.xori %20, %21 : vector<8x128xi32>
    %c16_i32 = arith.constant 16 : i32
    %23 = vector.broadcast %c16_i32 : i32 to vector<8x128xi32>
    %24 = arith.shrui %22, %23 : vector<8x128xi32>
    %25 = arith.xori %22, %24 : vector<8x128xi32>
    %c2146121005_i32 = arith.constant 2146121005 : i32
    %26 = vector.broadcast %c2146121005_i32 : i32 to vector<8x128xi32>
    %27 = arith.muli %25, %26 : vector<8x128xi32>
    %c15_i32 = arith.constant 15 : i32
    %28 = vector.broadcast %c15_i32 : i32 to vector<8x128xi32>
    %29 = arith.shrui %27, %28 : vector<8x128xi32>
    %30 = arith.xori %27, %29 : vector<8x128xi32>
    %c-2073254261_i32 = arith.constant -2073254261 : i32
    %31 = vector.broadcast %c-2073254261_i32 : i32 to vector<8x128xi32>
    %32 = arith.muli %30, %31 : vector<8x128xi32>
    %c16_i32_6 = arith.constant 16 : i32
    %33 = vector.broadcast %c16_i32_6 : i32 to vector<8x128xi32>
    %34 = arith.shrui %32, %33 : vector<8x128xi32>
    %35 = arith.xori %32, %34 : vector<8x128xi32>
    %c1288490188_i32 = arith.constant 1288490188 : i32
    %36 = vector.broadcast %c1288490188_i32 : i32 to vector<8x128xi32>
    %37 = arith.cmpi uge, %35, %36 : vector<8x128xi32>
    %cst_7 = arith.constant 0.000000e+00 : f32
    %38 = vector.broadcast %cst_7 : f32 to vector<8x128xf32>
    %39 = arith.select %37, %11, %38 : vector<8x128xi1>, vector<8x128xf32>
    %40 = arith.truncf %39 : vector<8x128xf32> to vector<8x128xbf16>
    %c0_8 = arith.constant 0 : index
    %c0_9 = arith.constant 0 : index
    %41 = vector.load %arg5[%c0_8, %c0_9] : memref<128x128xbf16, #tpu.memory_space<vmem>>, vector<128x128xbf16>
    %cst_10 = arith.constant dense<0.000000e+00> : vector<8x128xf32>
    %42 = tpu.matmul %40, %41, %cst_10 {dimension_numbers = #tpu.dot_dimension_numbers<[1], [0], [0], [1], [0, 0, 1, 1], [], []>} : vector<8x128xbf16>, vector<128x128xbf16>, vector<8x128xf32> -> vector<8x128xf32>
    %c0_11 = arith.constant 0 : index
    %c0_12 = arith.constant 0 : index
    %43 = vector.load %arg6[%c0_11, %c0_12] : memref<8x128xf32, #tpu.memory_space<vmem>>, vector<8x128xf32>
    tpu.vector_store %arg6[%c0_11, %c0_12], %42 {strides = array<i32>} : memref<8x128xf32, #tpu.memory_space<vmem>>, vector<8x128xf32>,
    %cst_13 = arith.constant dense<0.000000e+00> : vector<128xf32>
    %44 = vector.multi_reduction <add>, %42, %cst_13 [0] : vector<8x128xf32> to vector<128xf32>
    %45 = vector.shape_cast %44 : vector<128xf32> to vector<1x128xf32>
    %46 = arith.mulf %42, %42 : vector<8x128xf32>
    %cst_14 = arith.constant dense<0.000000e+00> : vector<128xf32>
    %47 = vector.multi_reduction <add>, %46, %cst_14 [0] : vector<8x128xf32> to vector<128xf32>
    %48 = vector.shape_cast %47 : vector<128xf32> to vector<1x128xf32>
    %49 = tpu.iota {dimensions = array<i32: 0>} : vector<8x128xi32>
    %c0_i32 = arith.constant 0 : i32
    %50 = vector.broadcast %c0_i32 : i32 to vector<8x128xi32>
    %51 = arith.cmpi eq, %49, %50 : vector<8x128xi32>
    %c1_i32 = arith.constant 1 : i32
    %52 = vector.broadcast %c1_i32 : i32 to vector<8x128xi32>
    %53 = arith.cmpi eq, %49, %52 : vector<8x128xi32>
    %cst_15 = arith.constant 0.000000e+00 : f32
    %54 = vector.shape_cast %48 : vector<1x128xf32> to vector<1x128xf32>
    %55 = vector.broadcast %54 : vector<1x128xf32> to vector<8x128xf32>
    %56 = vector.broadcast %cst_15 : f32 to vector<8x128xf32>
    %57 = arith.select %53, %55, %56 : vector<8x128xi1>, vector<8x128xf32>
    %58 = vector.shape_cast %45 : vector<1x128xf32> to vector<1x128xf32>
    %59 = vector.broadcast %58 : vector<1x128xf32> to vector<8x128xf32>
    %60 = arith.select %51, %59, %57 : vector<8x128xi1>, vector<8x128xf32>
    %c0_16 = arith.constant 0 : index
    %c0_17 = arith.constant 0 : index
    %c0_18 = arith.constant 0 : index
    %61 = vector.load %arg7[%c0_16, %c0_17, %c0_18] : memref<1x8x128xf32, #tpu.memory_space<vmem>>, vector<1x8x128xf32>
    %62 = vector.shape_cast %61 : vector<1x8x128xf32> to vector<8x128xf32>
    %63 = vector.shape_cast %60 : vector<8x128xf32> to vector<1x8x128xf32>
    tpu.vector_store %arg7[%c0_16, %c0_17, %c0_18], %63 {strides = array<i32>} : memref<1x8x128xf32, #tpu.memory_space<vmem>>, vector<1x8x128xf32>,
    return
  }
  func.func @transform_0(%arg0: i32, %arg1: memref<1xi32, #tpu.memory_space<smem>>) -> (i32, i32) {
    %c0_i32 = arith.constant 0 : i32
    %c0_i32_0 = arith.constant 0 : i32
    return %arg0, %c0_i32 : i32, i32
  }
  func.func @transform_1(%arg0: i32, %arg1: memref<1xi32, #tpu.memory_space<smem>>) -> (i32, i32) {
    %c0_i32 = arith.constant 0 : i32
    %c0_i32_0 = arith.constant 0 : i32
    %c0_i32_1 = arith.constant 0 : i32
    return %c0_i32, %c0_i32_0 : i32, i32
  }
  func.func @transform_2(%arg0: i32, %arg1: memref<1xi32, #tpu.memory_space<smem>>) -> (i32, i32) {
    %c0_i32 = arith.constant 0 : i32
    %c0_i32_0 = arith.constant 0 : i32
    %c0_i32_1 = arith.constant 0 : i32
    return %c0_i32, %c0_i32_0 : i32, i32
  }
  func.func @transform_3(%arg0: i32, %arg1: memref<1xi32, #tpu.memory_space<smem>>) -> (i32, i32) {
    %c0_i32 = arith.constant 0 : i32
    %c0_i32_0 = arith.constant 0 : i32
    %c0_i32_1 = arith.constant 0 : i32
    return %c0_i32, %c0_i32_0 : i32, i32
  }
  func.func @transform_4(%arg0: i32, %arg1: memref<1xi32, #tpu.memory_space<smem>>) -> (i32, i32) {
    %c0_i32 = arith.constant 0 : i32
    %c0_i32_0 = arith.constant 0 : i32
    return %arg0, %c0_i32 : i32, i32
  }
  func.func @transform_5(%arg0: i32, %arg1: memref<1xi32, #tpu.memory_space<smem>>) -> (i32, i32, i32) {
    %c0_i32 = arith.constant 0 : i32
    %c0_i32_0 = arith.constant 0 : i32
    %c0_i32_1 = arith.constant 0 : i32
    return %arg0, %c0_i32, %c0_i32_0 : i32, i32, i32
  }
}

</mosaic_0001>

<llo_original>
// kernel: ori_dnn_forward.3
$region0: #{ori_dnn_forward.3}
  #allocation0 [shape = 'u32[]', space=smem, size = 0x4, offset = 0x4, fixed_abs, tag = 'smem constant byte address 0x4 - core index']
  #allocation1 [shape = 'u32[144,128]{1,0:T(1,128)}', space=vmem, size = 0x12000, scoped, tag = 'internal scratch']
  %s0 = inlined_call_operand.vmem [shape: bf16[8,784], index: 0, kind: input, shape index: {}]
  %s1 = inlined_call_operand.hbm [shape: bf16[784,128], index: 1, kind: input, shape index: {}]
  %s2 = inlined_call_operand.vmem [shape: f32[8,128], index: 2, kind: output, shape index: {0}]
  %s3 = inlined_call_operand.vmem [shape: f32[1,8,128], index: 3, kind: output, shape index: {1}]
  %4 = xla_tuple %s2, %s3
  %s5 = sld [smem:[#allocation0]]
  $region30: #{ori_dnn_forward.3} parent=0
    _
  %s7 = ssub.s32 1, %s5
  %s8 = scalar_select 0, %s7, %s5
  $region1: #{ori_dnn_forward.3} parent=0
    #allocation2 [shape = 'u8[200704]{0}', space=vmem, size = 0x31000, scoped, tag = 'input window, operand 1, single buffered']
    #allocation3 [shape = 's32[1]{0}', space=sflag, size = 0x4, scoped, tag = 'scoped memory for ori_dnn_forward.3']
    %9 = vsyncpa [#allocation3], 0
    // Predicated region
    $region2: #{ori_dnn_forward.3} parent=1 // pred_check
      _
    $region3: #{ori_dnn_forward.3} parent=1 // pred_check_branch
      %11 = sbr.rel (0) target = $region5
    $region4: #{ori_dnn_forward.3} parent=1 // pred_region
      _
    $region5: #{ori_dnn_forward.3} parent=1 // pred_fallthru
      _
    // Predicated region
    $region6: #{ori_dnn_forward.3} parent=1 // pred_check
      _
    $region7: #{ori_dnn_forward.3} parent=1 // pred_check_branch
      %13 = sbr.rel (0) target = $region9
    $region8: #{ori_dnn_forward.3} parent=1 // pred_region
      %s15 = ssub.s32 6272, 6272
      %16 = vsyncadd [#allocation3], %s15
      %s17 = sshll.u32 [#allocation2], 4
      %s18 = int_to_ptr.vmem [resolvable:$true] %s17
      %23 = dma.hbm_to_vmem [thread:$0]  %s1, 6272, %s18, [#allocation3], 64, 64, 4
    $region9: #{ori_dnn_forward.3} parent=1 // pred_fallthru
      _
    // Predicated region
    $region10: #{ori_dnn_forward.3} parent=1 // pred_check
      _
    $region11: #{ori_dnn_forward.3} parent=1 // pred_check_branch
      %25 = sbr.rel (0) target = $region13
    $region12: #{ori_dnn_forward.3} parent=1 // pred_region
      %26 = dma.done [#allocation3], 6272
    $region13: #{ori_dnn_forward.3} parent=1 // pred_fallthru
      _
    %v28 = vld [vmem:[%s0] sm:$0xff]
    %v29 = vld [vmem:[%s0 + $0x8] sm:$0xff]
    %v30 = vld [vmem:[%s0 + $0x10] sm:$0xff]
    %v31 = vld [vmem:[%s0 + $0x18] sm:$0xf]
    %v32 = vld [vmem:[#allocation2] sm:$0xf]
    %v33 = vld [vmem:[#allocation2 + $0x4] sm:$0xf]
    %v34 = vld [vmem:[#allocation2 + $0x8] sm:$0xf]
    %v35 = vld [vmem:[#allocation2 + $0xc] sm:$0xf]
    %v36 = vld [vmem:[#allocation2 + $0x10] sm:$0xf]
    %v37 = vld [vmem:[#allocation2 + $0x14] sm:$0xf]
    %v38 = vld [vmem:[#allocation2 + $0x18] sm:$0xf]
    %v39 = vld [vmem:[#allocation2 + $0x1c] sm:$0xf]
    %v40 = vld [vmem:[#allocation2 + $0x20] sm:$0xf]
    %v41 = vld [vmem:[#allocation2 + $0x24] sm:$0xf]
    %v42 = vld [vmem:[#allocation2 + $0x28] sm:$0xf]
    %v43 = vld [vmem:[#allocation2 + $0x2c] sm:$0xf]
    %v44 = vld [vmem:[#allocation2 + $0x30] sm:$0xf]
    %v45 = vld [vmem:[#allocation2 + $0x34] sm:$0xf]
    %v46 = vld [vmem:[#allocation2 + $0x38] sm:$0xf]
    %v47 = vld [vmem:[#allocation2 + $0x3c] sm:$0xf]
    %v48 = vld [vmem:[#allocation2 + $0x40] sm:$0xf]
    %v49 = vld [vmem:[#allocation2 + $0x44] sm:$0xf]
    %v50 = vld [vmem:[#allocation2 + $0x48] sm:$0xf]
    %v51 = vld [vmem:[#allocation2 + $0x4c] sm:$0xf]
    %v52 = vld [vmem:[#allocation2 + $0x50] sm:$0xf]
    %v53 = vld [vmem:[#allocation2 + $0x54] sm:$0xf]
    %v54 = vld [vmem:[#allocation2 + $0x58] sm:$0xf]
    %v55 = vld [vmem:[#allocation2 + $0x5c] sm:$0xf]
    %v56 = vld [vmem:[#allocation2 + $0x60] sm:$0xf]
    %v57 = vld [vmem:[#allocation2 + $0x64] sm:$0xf]
    %v58 = vld [vmem:[#allocation2 + $0x68] sm:$0xf]
    %v59 = vld [vmem:[#allocation2 + $0x6c] sm:$0xf]
    %v60 = vld [vmem:[#allocation2 + $0x70] sm:$0xf]
    %v61 = vld [vmem:[#allocation2 + $0x74] sm:$0xf]
    %v62 = vld [vmem:[#allocation2 + $0x78] sm:$0xf]
    %v63 = vld [vmem:[#allocation2 + $0x7c] sm:$0xf]
    %v64 = vld [vmem:[#allocation2 + $0x80] sm:$0xf]
    %v65 = vld [vmem:[#allocation2 + $0x84] sm:$0xf]
    %v66 = vld [vmem:[#allocation2 + $0x88] sm:$0xf]
    %v67 = vld [vmem:[#allocation2 + $0x8c] sm:$0xf]
    %v68 = vld [vmem:[#allocation2 + $0x90] sm:$0xf]
    %v69 = vld [vmem:[#allocation2 + $0x94] sm:$0xf]
    %v70 = vld [vmem:[#allocation2 + $0x98] sm:$0xf]
    %v71 = vld [vmem:[#allocation2 + $0x9c] sm:$0xf]
    %v72 = vld [vmem:[#allocation2 + $0xa0] sm:$0xf]
    %v73 = vld [vmem:[#allocation2 + $0xa4] sm:$0xf]
    %v74 = vld [vmem:[#allocation2 + $0xa8] sm:$0xf]
    %v75 = vld [vmem:[#allocation2 + $0xac] sm:$0xf]
    %v76 = vld [vmem:[#allocation2 + $0xb0] sm:$0xf]
    %v77 = vld [vmem:[#allocation2 + $0xb4] sm:$0xf]
    %v78 = vld [vmem:[#allocation2 + $0xb8] sm:$0xf]
    %v79 = vld [vmem:[#allocation2 + $0xbc] sm:$0xf]
    %v80 = vld [vmem:[#allocation2 + $0xc0] sm:$0xf]
    %v81 = vld [vmem:[#allocation2 + $0xc4] sm:$0xf]
    %v82 = vld [vmem:[#allocation2 + $0xc8] sm:$0xf]
    %v83 = vld [vmem:[#allocation2 + $0xcc] sm:$0xf]
    %v84 = vld [vmem:[#allocation2 + $0xd0] sm:$0xf]
    %v85 = vld [vmem:[#allocation2 + $0xd4] sm:$0xf]
    %v86 = vld [vmem:[#allocation2 + $0xd8] sm:$0xf]
    %v87 = vld [vmem:[#allocation2 + $0xdc] sm:$0xf]
    %v88 = vld [vmem:[#allocation2 + $0xe0] sm:$0xf]
    %v89 = vld [vmem:[#allocation2 + $0xe4] sm:$0xf]
    %v90 = vld [vmem:[#allocation2 + $0xe8] sm:$0xf]
    %v91 = vld [vmem:[#allocation2 + $0xec] sm:$0xf]
    %v92 = vld [vmem:[#allocation2 + $0xf0] sm:$0xf]
    %v93 = vld [vmem:[#allocation2 + $0xf4] sm:$0xf]
    %v94 = vld [vmem:[#allocation2 + $0xf8] sm:$0xf]
    %v95 = vld [vmem:[#allocation2 + $0xfc] sm:$0xf]
    %v96 = vld [vmem:[#allocation2 + $0x100] sm:$0xf]
    %v97 = vld [vmem:[#allocation2 + $0x104] sm:$0xf]
    %v98 = vld [vmem:[#allocation2 + $0x108] sm:$0xf]
    %v99 = vld [vmem:[#allocation2 + $0x10c] sm:$0xf]
    %v100 = vld [vmem:[#allocation2 + $0x110] sm:$0xf]
    %v101 = vld [vmem:[#allocation2 + $0x114] sm:$0xf]
    %v102 = vld [vmem:[#allocation2 + $0x118] sm:$0xf]
    %v103 = vld [vmem:[#allocation2 + $0x11c] sm:$0xf]
    %v104 = vld [vmem:[#allocation2 + $0x120] sm:$0xf]
    %v105 = vld [vmem:[#allocation2 + $0x124] sm:$0xf]
    %v106 = vld [vmem:[#allocation2 + $0x128] sm:$0xf]
    %v107 = vld [vmem:[#allocation2 + $0x12c] sm:$0xf]
    %v108 = vld [vmem:[#allocation2 + $0x130] sm:$0xf]
    %v109 = vld [vmem:[#allocation2 + $0x134] sm:$0xf]
    %v110 = vld [vmem:[#allocation2 + $0x138] sm:$0xf]
    %v111 = vld [vmem:[#allocation2 + $0x13c] sm:$0xf]
    %v112 = vld [vmem:[#allocation2 + $0x140] sm:$0xf]
    %v113 = vld [vmem:[#allocation2 + $0x144] sm:$0xf]
    %v114 = vld [vmem:[#allocation2 + $0x148] sm:$0xf]
    %v115 = vld [vmem:[#allocation2 + $0x14c] sm:$0xf]
    %v116 = vld [vmem:[#allocation2 + $0x150] sm:$0xf]
    %v117 = vld [vmem:[#allocation2 + $0x154] sm:$0xf]
    %v118 = vld [vmem:[#allocation2 + $0x158] sm:$0xf]
    %v119 = vld [vmem:[#allocation2 + $0x15c] sm:$0xf]
    %v120 = vld [vmem:[#allocation2 + $0x160] sm:$0xf]
    %v121 = vld [vmem:[#allocation2 + $0x164] sm:$0xf]
    %v122 = vld [vmem:[#allocation2 + $0x168] sm:$0xf]
    %v123 = vld [vmem:[#allocation2 + $0x16c] sm:$0xf]
    %v124 = vld [vmem:[#allocation2 + $0x170] sm:$0xf]
    %v125 = vld [vmem:[#allocation2 + $0x174] sm:$0xf]
    %v126 = vld [vmem:[#allocation2 + $0x178] sm:$0xf]
    %v127 = vld [vmem:[#allocation2 + $0x17c] sm:$0xf]
    %v128 = vld [vmem:[#allocation2 + $0x180] sm:$0xf]
    %v129 = vld [vmem:[#allocation2 + $0x184] sm:$0xf]
    %v134 = vunpack.c.l.b16 %v28
    %v135 = vunpack.c.h.b16 %v28
    %v136 = vunpack.c.l.b16 %v29
    %v137 = vunpack.c.h.b16 %v29
    %v138 = vunpack.c.l.b16 %v30
    %v139 = vunpack.c.h.b16 %v30
    %v140 = vunpack.c.l.b16 %v31
    %v141 = vpack.c.b16 %v134, %v134
    %v142 = vpack.c.b16 %v135, %v135
    %v143 = vpack.c.b16 %v136, %v136
    %v144 = vpack.c.b16 %v137, %v137
    %v145 = vpack.c.b16 %v138, %v138
    %v146 = vpack.c.b16 %v139, %v139
    %v147 = vpack.c.b16 %v140, %v140
    %v252 = vunpack.c.l.b16 %v32
    %v253 = vunpack.c.l.b16 %v33
    %v254 = vunpack.c.l.b16 %v34
    %v255 = vunpack.c.l.b16 %v35
    %v256 = vunpack.c.l.b16 %v36
    %v257 = vunpack.c.l.b16 %v37
    %v258 = vunpack.c.l.b16 %v38
    %v259 = vunpack.c.l.b16 %v39
    %v260 = vunpack.c.l.b16 %v40
    %v261 = vunpack.c.l.b16 %v41
    %v262 = vunpack.c.l.b16 %v42
    %v263 = vunpack.c.l.b16 %v43
    %v264 = vunpack.c.l.b16 %v44
    %v265 = vunpack.c.l.b16 %v45
    %v266 = vunpack.c.l.b16 %v46
    %v267 = vunpack.c.l.b16 %v47
    %v268 = vunpack.c.l.b16 %v48
    %v269 = vunpack.c.l.b16 %v49
    %v270 = vunpack.c.l.b16 %v50
    %v271 = vunpack.c.l.b16 %v51
    %v272 = vunpack.c.l.b16 %v52
    %v273 = vunpack.c.l.b16 %v53
    %v274 = vunpack.c.l.b16 %v54
    %v275 = vunpack.c.l.b16 %v55
    %v276 = vunpack.c.l.b16 %v56
    %v277 = vunpack.c.l.b16 %v57
    %v278 = vunpack.c.l.b16 %v58
    %v279 = vunpack.c.l.b16 %v59
    %v280 = vunpack.c.l.b16 %v60
    %v281 = vunpack.c.l.b16 %v61
    %v282 = vunpack.c.l.b16 %v62
    %v283 = vunpack.c.l.b16 %v63
    %v284 = vunpack.c.l.b16 %v64
    %v285 = vunpack.c.l.b16 %v65
    %v286 = vunpack.c.l.b16 %v66
    %v287 = vunpack.c.l.b16 %v67
    %v288 = vunpack.c.l.b16 %v68
    %v289 = vunpack.c.l.b16 %v69
    %v290 = vunpack.c.l.b16 %v70
    %v291 = vunpack.c.l.b16 %v71
    %v292 = vunpack.c.l.b16 %v72
    %v293 = vunpack.c.l.b16 %v73
    %v294 = vunpack.c.l.b16 %v74
    %v295 = vunpack.c.l.b16 %v75
    %v296 = vunpack.c.l.b16 %v76
    %v297 = vunpack.c.l.b16 %v77
    %v298 = vunpack.c.l.b16 %v78
    %v299 = vunpack.c.l.b16 %v79
    %v300 = vunpack.c.l.b16 %v80
    %v301 = vunpack.c.l.b16 %v81
    %v302 = vunpack.c.l.b16 %v82
    %v303 = vunpack.c.l.b16 %v83
    %v304 = vunpack.c.l.b16 %v84
    %v305 = vunpack.c.l.b16 %v85
    %v306 = vunpack.c.l.b16 %v86
    %v307 = vunpack.c.l.b16 %v87
    %v308 = vunpack.c.l.b16 %v88
    %v309 = vunpack.c.l.b16 %v89
    %v310 = vunpack.c.l.b16 %v90
    %v311 = vunpack.c.l.b16 %v91
    %v312 = vunpack.c.l.b16 %v92
    %v313 = vunpack.c.l.b16 %v93
    %v314 = vunpack.c.l.b16 %v94
    %v315 = vunpack.c.l.b16 %v95
    %v316 = vunpack.c.l.b16 %v96
    %v317 = vunpack.c.l.b16 %v97
    %v318 = vunpack.c.l.b16 %v98
    %v319 = vunpack.c.l.b16 %v99
    %v320 = vunpack.c.l.b16 %v100
    %v321 = vunpack.c.l.b16 %v101
    %v322 = vunpack.c.l.b16 %v102
    %v323 = vunpack.c.l.b16 %v103
    %v324 = vunpack.c.l.b16 %v104
    %v325 = vunpack.c.l.b16 %v105
    %v326 = vunpack.c.l.b16 %v106
    %v327 = vunpack.c.l.b16 %v107
    %v328 = vunpack.c.l.b16 %v108
    %v329 = vunpack.c.l.b16 %v109
    %v330 = vunpack.c.l.b16 %v110
    %v331 = vunpack.c.l.b16 %v111
    %v332 = vunpack.c.l.b16 %v112
    %v333 = vunpack.c.l.b16 %v113
    %v334 = vunpack.c.l.b16 %v114
    %v335 = vunpack.c.l.b16 %v115
    %v336 = vunpack.c.l.b16 %v116
    %v337 = vunpack.c.l.b16 %v117
    %v338 = vunpack.c.l.b16 %v118
    %v339 = vunpack.c.l.b16 %v119
    %v340 = vunpack.c.l.b16 %v120
    %v341 = vunpack.c.l.b16 %v121
    %v342 = vunpack.c.l.b16 %v122
    %v343 = vunpack.c.l.b16 %v123
    %v344 = vunpack.c.l.b16 %v124
    %v345 = vunpack.c.l.b16 %v125
    %v346 = vunpack.c.l.b16 %v126
    %v347 = vunpack.c.l.b16 %v127
    %v348 = vunpack.c.l.b16 %v128
    %v349 = vunpack.c.l.b16 %v129
    %v350 = vpack.c.b16 %v253, %v252
    %v351 = vpack.c.b16 %v255, %v254
    %v352 = vpack.c.b16 %v257, %v256
    %v353 = vpack.c.b16 %v259, %v258
    %v354 = vpack.c.b16 %v261, %v260
    %v355 = vpack.c.b16 %v263, %v262
    %v356 = vpack.c.b16 %v265, %v264
    %v357 = vpack.c.b16 %v267, %v266
    %v358 = vpack.c.b16 %v269, %v268
    %v359 = vpack.c.b16 %v271, %v270
    %v360 = vpack.c.b16 %v273, %v272
    %v361 = vpack.c.b16 %v275, %v274
    %v362 = vpack.c.b16 %v277, %v276
    %v363 = vpack.c.b16 %v279, %v278
    %v364 = vpack.c.b16 %v281, %v280
    %v365 = vpack.c.b16 %v283, %v282
    %v366 = vpack.c.b16 %v285, %v284
    %v367 = vpack.c.b16 %v287, %v286
    %v368 = vpack.c.b16 %v289, %v288
    %v369 = vpack.c.b16 %v291, %v290
    %v370 = vpack.c.b16 %v293, %v292
    %v371 = vpack.c.b16 %v295, %v294
    %v372 = vpack.c.b16 %v297, %v296
    %v373 = vpack.c.b16 %v299, %v298
    %v374 = vpack.c.b16 %v301, %v300
    %v375 = vpack.c.b16 %v303, %v302
    %v376 = vpack.c.b16 %v305, %v304
    %v377 = vpack.c.b16 %v307, %v306
    %v378 = vpack.c.b16 %v309, %v308
    %v379 = vpack.c.b16 %v311, %v310
    %v380 = vpack.c.b16 %v313, %v312
    %v381 = vpack.c.b16 %v315, %v314
    %v382 = vpack.c.b16 %v317, %v316
    %v383 = vpack.c.b16 %v319, %v318
    %v384 = vpack.c.b16 %v321, %v320
    %v385 = vpack.c.b16 %v323, %v322
    %v386 = vpack.c.b16 %v325, %v324
    %v387 = vpack.c.b16 %v327, %v326
    %v388 = vpack.c.b16 %v329, %v328
    %v389 = vpack.c.b16 %v331, %v330
    %v390 = vpack.c.b16 %v333, %v332
    %v391 = vpack.c.b16 %v335, %v334
    %v392 = vpack.c.b16 %v337, %v336
    %v393 = vpack.c.b16 %v339, %v338
    %v394 = vpack.c.b16 %v341, %v340
    %v395 = vpack.c.b16 %v343, %v342
    %v396 = vpack.c.b16 %v345, %v344
    %v397 = vpack.c.b16 %v347, %v346
    %v398 = vpack.c.b16 %v349, %v348
    %vm448 = vcmask 130048
    %v450 = vsel %vm448, %v147, 0
    %452 = vmatprep.subr.bf16.mxu0 0
    %453 = vmatpush1.bf16.msra.mxu0 %v357
    %454 = vmatprep.subr.bf16.mxu0 0
    %455 = vmatpush1.bf16.msra.mxu0 %v356
    %456 = vmatprep.subr.bf16.mxu0 0
    %457 = vmatpush1.bf16.msra.mxu0 %v355
    %458 = vmatprep.subr.bf16.mxu0 0
    %459 = vmatpush1.bf16.msra.mxu0 %v354
    %460 = vmatprep.subr.bf16.mxu0 0
    %461 = vmatpush1.bf16.msra.mxu0 %v353
    %462 = vmatprep.subr.bf16.mxu0 0
    %463 = vmatpush1.bf16.msra.mxu0 %v352
    %464 = vmatprep.subr.bf16.mxu0 0
    %465 = vmatpush1.bf16.msra.mxu0 %v351
    %466 = vmatprep.subr.bf16.mxu0 0
    %467 = vmatpush1.bf16.msra.mxu0 %v350
    %468 = vmatprep.subr.bf16.mxu0 0
    %469 = vmatpush2.bf16.msra.mxu0 %v365
    %470 = vmatprep.subr.bf16.mxu0 0
    %471 = vmatpush2.bf16.msra.mxu0 %v364
    %472 = vmatprep.subr.bf16.mxu0 0
    %473 = vmatpush2.bf16.msra.mxu0 %v363
    %474 = vmatprep.subr.bf16.mxu0 0
    %475 = vmatpush2.bf16.msra.mxu0 %v362
    %476 = vmatprep.subr.bf16.mxu0 0
    %477 = vmatpush2.bf16.msra.mxu0 %v361
    %478 = vmatprep.subr.bf16.mxu0 0
    %479 = vmatpush2.bf16.msra.mxu0 %v360
    %480 = vmatprep.subr.bf16.mxu0 0
    %481 = vmatpush2.bf16.msra.mxu0 %v359
    %482 = vmatprep.subr.bf16.mxu0 0
    %483 = vmatpush2.bf16.msra.mxu0 %v358
    %484 = vmatprep.mubr.bf16.mxu0 %v142
    %485 = vmatmul.mubr.bf16.gmra.mxu0 %v141
    %v486 = vpop.f32.mrf.mxu0
    %v487 = vadd.f32 0.0, %v486
    %v488 = vpop.f32.mrf.mxu0
    %v489 = vpop.f32.mrf.mxu0
    %v490 = vpop.f32.mrf.mxu0
    %491 = vdwg.mxu0
    %492 = vmatprep.subr.bf16.mxu0 0
    %493 = vmatpush1.bf16.msra.mxu0 %v373
    %494 = vmatprep.subr.bf16.mxu0 0
    %495 = vmatpush1.bf16.msra.mxu0 %v372
    %496 = vmatprep.subr.bf16.mxu0 0
    %497 = vmatpush1.bf16.msra.mxu0 %v371
    %498 = vmatprep.subr.bf16.mxu0 0
    %499 = vmatpush1.bf16.msra.mxu0 %v370
    %500 = vmatprep.subr.bf16.mxu0 0
    %501 = vmatpush1.bf16.msra.mxu0 %v369
    %502 = vmatprep.subr.bf16.mxu0 0
    %503 = vmatpush1.bf16.msra.mxu0 %v368
    %504 = vmatprep.subr.bf16.mxu0 0
    %505 = vmatpush1.bf16.msra.mxu0 %v367
    %506 = vmatprep.subr.bf16.mxu0 0
    %507 = vmatpush1.bf16.msra.mxu0 %v366
    %508 = vmatprep.subr.bf16.mxu0 0
    %509 = vmatpush2.bf16.msra.mxu0 %v381
    %510 = vmatprep.subr.bf16.mxu0 0
    %511 = vmatpush2.bf16.msra.mxu0 %v380
    %512 = vmatprep.subr.bf16.mxu0 0
    %513 = vmatpush2.bf16.msra.mxu0 %v379
    %514 = vmatprep.subr.bf16.mxu0 0
    %515 = vmatpush2.bf16.msra.mxu0 %v378
    %516 = vmatprep.subr.bf16.mxu0 0
    %517 = vmatpush2.bf16.msra.mxu0 %v377
    %518 = vmatprep.subr.bf16.mxu0 0
    %519 = vmatpush2.bf16.msra.mxu0 %v376
    %520 = vmatprep.subr.bf16.mxu0 0
    %521 = vmatpush2.bf16.msra.mxu0 %v375
    %522 = vmatprep.subr.bf16.mxu0 0
    %523 = vmatpush2.bf16.msra.mxu0 %v374
    %524 = vmatprep.mubr.bf16.mxu0 %v144
    %525 = vmatmul.mubr.bf16.gmra.mxu0 %v143
    %v526 = vpop.f32.mrf.mxu0
    %v527 = vadd.f32 %v487, %v526
    %v528 = vpop.f32.mrf.mxu0
    %v529 = vpop.f32.mrf.mxu0
    %v530 = vpop.f32.mrf.mxu0
    %531 = vdwg.mxu0
    %532 = vmatprep.subr.bf16.mxu0 0
    %533 = vmatpush1.bf16.msra.mxu0 %v389
    %534 = vmatprep.subr.bf16.mxu0 0
    %535 = vmatpush1.bf16.msra.mxu0 %v388
    %536 = vmatprep.subr.bf16.mxu0 0
    %537 = vmatpush1.bf16.msra.mxu0 %v387
    %538 = vmatprep.subr.bf16.mxu0 0
    %539 = vmatpush1.bf16.msra.mxu0 %v386
    %540 = vmatprep.subr.bf16.mxu0 0
    %541 = vmatpush1.bf16.msra.mxu0 %v385
    %542 = vmatprep.subr.bf16.mxu0 0
    %543 = vmatpush1.bf16.msra.mxu0 %v384
    %544 = vmatprep.subr.bf16.mxu0 0
    %545 = vmatpush1.bf16.msra.mxu0 %v383
    %546 = vmatprep.subr.bf16.mxu0 0
    %547 = vmatpush1.bf16.msra.mxu0 %v382
    %548 = vmatprep.subr.bf16.mxu0 0
    %549 = vmatpush2.bf16.msra.mxu0 %v397
    %550 = vmatprep.subr.bf16.mxu0 0
    %551 = vmatpush2.bf16.msra.mxu0 %v396
    %552 = vmatprep.subr.bf16.mxu0 0
    %553 = vmatpush2.bf16.msra.mxu0 %v395
    %554 = vmatprep.subr.bf16.mxu0 0
    %555 = vmatpush2.bf16.msra.mxu0 %v394
    %556 = vmatprep.subr.bf16.mxu0 0
    %557 = vmatpush2.bf16.msra.mxu0 %v393
    %558 = vmatprep.subr.bf16.mxu0 0
    %559 = vmatpush2.bf16.msra.mxu0 %v392
    %560 = vmatprep.subr.bf16.mxu0 0
    %561 = vmatpush2.bf16.msra.mxu0 %v391
    %562 = vmatprep.subr.bf16.mxu0 0
    %563 = vmatpush2.bf16.msra.mxu0 %v390
    %564 = vmatprep.mubr.bf16.mxu0 %v146
    %565 = vmatmul.mubr.bf16.gmra.mxu0 %v145
    %v566 = vpop.f32.mrf.mxu0
    %v567 = vadd.f32 %v527, %v566
    %v568 = vpop.f32.mrf.mxu0
    %v569 = vpop.f32.mrf.mxu0
    %v570 = vpop.f32.mrf.mxu0
    %571 = vdwg.mxu0
    %572 = vmatprep.subr.bf16.mxu0 0
    %573 = vmatpush1.bf16.msra.mxu0 0
    %574 = vmatprep.subr.bf16.mxu0 0
    %575 = vmatpush1.bf16.msra.mxu0 0
    %576 = vmatprep.subr.bf16.mxu0 0
    %577 = vmatpush1.bf16.msra.mxu0 0
    %578 = vmatprep.subr.bf16.mxu0 0
    %579 = vmatpush1.bf16.msra.mxu0 0
    %580 = vmatprep.subr.bf16.mxu0 0
    %581 = vmatpush1.bf16.msra.mxu0 0
    %582 = vmatprep.subr.bf16.mxu0 0
    %583 = vmatpush1.bf16.msra.mxu0 0
    %584 = vmatprep.subr.bf16.mxu0 0
    %585 = vmatpush1.bf16.msra.mxu0 0
    %586 = vmatprep.subr.bf16.mxu0 0
    %587 = vmatpush1.bf16.msra.mxu0 %v398
    %588 = vmatprep.subr.bf16.mxu0 0
    %589 = vmatpush2.bf16.msra.mxu0 0
    %590 = vmatprep.subr.bf16.mxu0 0
    %591 = vmatpush2.bf16.msra.mxu0 0
    %592 = vmatprep.subr.bf16.mxu0 0
    %593 = vmatpush2.bf16.msra.mxu0 0
    %594 = vmatprep.subr.bf16.mxu0 0
    %595 = vmatpush2.bf16.msra.mxu0 0
    %596 = vmatprep.subr.bf16.mxu0 0
    %597 = vmatpush2.bf16.msra.mxu0 0
    %598 = vmatprep.subr.bf16.mxu0 0
    %599 = vmatpush2.bf16.msra.mxu0 0
    %600 = vmatprep.subr.bf16.mxu0 0
    %601 = vmatpush2.bf16.msra.mxu0 0
    %602 = vmatprep.subr.bf16.mxu0 0
    %603 = vmatpush2.bf16.msra.mxu0 0
    %604 = vmatprep.mubr.bf16.mxu0 0
    %605 = vmatmul.mubr.bf16.gmra.mxu0 %v450
    %v606 = vpop.f32.mrf.mxu0
    %v607 = vadd.f32 %v567, %v606
    %v608 = vpop.f32.mrf.mxu0
    %v609 = vpop.f32.mrf.mxu0
    %v610 = vpop.f32.mrf.mxu0
    %611 = vdwg.mxu0
    %612 = vst [vmem:[%s2] sm:$0xff] %v607
    %v613 = vrot.slane %v607, 4
    %v614 = vadd.f32 %v607, %v613
    %v615 = vrot.slane %v614, 2
    %v616 = vadd.f32 %v614, %v615
    %v617 = vrot.slane %v616, 1
    %v618 = vadd.f32 %v616, %v617
    %v619 = vmul.f32 %v607, %v607
    %v620 = vrot.slane %v619, 4
    %v621 = vadd.f32 %v619, %v620
    %v622 = vrot.slane %v621, 2
    %v623 = vadd.f32 %v621, %v622
    %v624 = vrot.slane %v623, 1
    %v625 = vadd.f32 %v623, %v624
    %v626 = vlaneseq
    %v627 = vshrl.u32 %v626, 7
    %vm628 = vcmp.eq.s32.totalorder %v627, 0
    %vm629 = vcmp.eq.s32.totalorder %v627, 1
    %v630 = vsel %vm629, %v625, 0.0
    %v631 = vsel %vm628, %v618, %v630
    %632 = vst [vmem:[%s3] sm:$0xff] %v631
    // Predicated region
    $region14: #{ori_dnn_forward.3} parent=1 // pred_check
      _
    $region15: #{ori_dnn_forward.3} parent=1 // pred_check_branch
      %634 = sbr.rel (0) target = $region17
    $region16: #{ori_dnn_forward.3} parent=1 // pred_region
      _
    $region17: #{ori_dnn_forward.3} parent=1 // pred_fallthru
      _
    // Predicated region
    $region18: #{ori_dnn_forward.3} parent=1 // pred_check
      _
    $region19: #{ori_dnn_forward.3} parent=1 // pred_check_branch
      %636 = sbr.rel (0) target = $region21
    $region20: #{ori_dnn_forward.3} parent=1 // pred_region
      _
    $region21: #{ori_dnn_forward.3} parent=1 // pred_fallthru
      _
    // Predicated region
    $region22: #{ori_dnn_forward.3} parent=1 // pred_check
      _
    $region23: #{ori_dnn_forward.3} parent=1 // pred_check_branch
      %638 = sbr.rel (0) target = $region25
    $region24: #{ori_dnn_forward.3} parent=1 // pred_region
      _
    $region25: #{ori_dnn_forward.3} parent=1 // pred_fallthru
      _
    // Predicated region
    $region26: #{ori_dnn_forward.3} parent=1 // pred_check
      _
    $region27: #{ori_dnn_forward.3} parent=1 // pred_check_branch
      %640 = sbr.rel (0) target = $region29
    $region28: #{ori_dnn_forward.3} parent=1 // pred_region
      _
    $region29: #{ori_dnn_forward.3} parent=1 // pred_fallthru
      _
    %641 = vsyncpa [#allocation3], 1

// kernel: ori_dnn_forward.5
$region0: #{ori_dnn_forward.5}
  #allocation0 [shape = 'u32[]', space=smem, size = 0x4, offset = 0x4, fixed_abs, tag = 'smem constant byte address 0x4 - core index']
  #allocation1 [shape = 'u32[144,128]{1,0:T(1,128)}', space=vmem, size = 0x12000, scoped, tag = 'internal scratch']
  #allocation2 [shape = 's32[1]{0}', space=sflag, size = 0x4, scoped, tag = 'scoped memory for ori_dnn_forward.5']
  #allocation3 [shape = 's32[1]{0:T(128)S(6)}', space=smem, size = 0x200, scoped, tag = 'prefetched SMEM operand 0']
  %s0 = inlined_call_operand.<no memory space> [shape: s32[1], index: 0, kind: input, shape index: {}]
  %s1 = inlined_call_operand.vmem [shape: f32[8,128], index: 1, kind: input, shape index: {}]
  %s2 = inlined_call_operand.vmem [shape: f32[1,128], index: 2, kind: input, shape index: {}]
  %s3 = inlined_call_operand.vmem [shape: f32[1,128], index: 3, kind: input, shape index: {}]
  %s4 = inlined_call_operand.vmem [shape: bf16[128,10], index: 4, kind: input, shape index: {}]
  %s5 = inlined_call_operand.vmem [shape: f32[1,10], index: 5, kind: input, shape index: {}]
  %s6 = inlined_call_operand.hbm [shape: f32[8,10], index: 6, kind: output, shape index: {}]
  %s7 = sld [smem:[#allocation0]]
  $region30: #{ori_dnn_forward.5} parent=0
    _
  %s9 = ssub.s32 1, %s7
  %s10 = scalar_select 0, %s9, %s7
  %11 = sst [smem:[#allocation3]] %s0
  $region1: #{ori_dnn_forward.5} parent=0
    #allocation4 [shape = 'u8[4096]{0}', space=vmem, size = 0x1000, scoped, tag = 'output window, operand 0, single buffered']
    #allocation5 [shape = 's32[1]{0}', space=sflag, size = 0x4, scoped, tag = 'scoped memory for ori_dnn_forward.5']
    %12 = vsyncpa [#allocation5], 0
    // Predicated region
    $region2: #{ori_dnn_forward.5} parent=1 // pred_check
      _
    $region3: #{ori_dnn_forward.5} parent=1 // pred_check_branch
      %14 = sbr.rel (0) target = $region5
    $region4: #{ori_dnn_forward.5} parent=1 // pred_region
      _
    $region5: #{ori_dnn_forward.5} parent=1 // pred_fallthru
      _
    // Predicated region
    $region6: #{ori_dnn_forward.5} parent=1 // pred_check
      _
    $region7: #{ori_dnn_forward.5} parent=1 // pred_check_branch
      %16 = sbr.rel (0) target = $region9
    $region8: #{ori_dnn_forward.5} parent=1 // pred_region
      _
    $region9: #{ori_dnn_forward.5} parent=1 // pred_fallthru
      _
    // Predicated region
    $region10: #{ori_dnn_forward.5} parent=1 // pred_check
      _
    $region11: #{ori_dnn_forward.5} parent=1 // pred_check_branch
      %18 = sbr.rel (0) target = $region13
    $region12: #{ori_dnn_forward.5} parent=1 // pred_region
      _
    $region13: #{ori_dnn_forward.5} parent=1 // pred_fallthru
      _
    // Predicated region
    $region14: #{ori_dnn_forward.5} parent=1 // pred_check
      _
    $region15: #{ori_dnn_forward.5} parent=1 // pred_check_branch
      %20 = sbr.rel (0) target = $region17
    $region16: #{ori_dnn_forward.5} parent=1 // pred_region
      _
    $region17: #{ori_dnn_forward.5} parent=1 // pred_fallthru
      _
    // Predicated region
    $region18: #{ori_dnn_forward.5} parent=1 // pred_check
      _
    $region19: #{ori_dnn_forward.5} parent=1 // pred_check_branch
      %22 = sbr.rel (0) target = $region21
    $region20: #{ori_dnn_forward.5} parent=1 // pred_region
      _
    $region21: #{ori_dnn_forward.5} parent=1 // pred_fallthru
      _
    %s24 = sld [smem:[#allocation3]]
    %s25 = sxor.u32 %s24, 2654435769
    %s26 = smul.u32 0, 8
    %v27 = vld [vmem:[%s1] sm:$0xff]
    %v28 = vld [vmem:[%s2] sm:$0x1]
    %v29 = vld [vmem:[%s3] sm:$0x1]
    %v31 = vlaneseq
    %v32 = vshrl.u32 %v31, 7
    %v33 = vsub.s32 0, %v32
    %v34 = vrot.slane %v28, %v33
    %v36 = vmul.f32 %v27, %v34
    %v38 = vlaneseq
    %v39 = vshrl.u32 %v38, 7
    %v40 = vsub.s32 0, %v39
    %v41 = vrot.slane %v29, %v40
    %v43 = vadd.f32 %v36, %v41
    %v44 = vmax.f32 %v43, 0.0
    %v45 = vlaneseq
    %v46 = vshrl.u32 %v45, 7
    %v47 = vstv %s26
    %v48 = vadd.s32 %v46, %v47
    %v49 = vlaneseq
    %v50 = vand.u32 %v49, 127
    %v51 = vmul.u32 %v48, 2654435761
    %v52 = vmul.u32 %v50, 2246822519
    %v53 = vxor.u32 %v51, %v52
    %v54 = vstv %s25
    %v55 = vxor.u32 %v53, %v54
    %v56 = vshrl.u32 %v55, 16
    %v57 = vxor.u32 %v55, %v56
    %v58 = vmul.u32 %v57, 2146121005
    %v59 = vshrl.u32 %v58, 15
    %v60 = vxor.u32 %v58, %v59
    %v61 = vmul.u32 %v60, 2221713035
    %v62 = vshrl.u32 %v61, 16
    %v63 = vxor.u32 %v61, %v62
    %vm64 = vcmp.ge.u32.totalorder %v63, 858993459
    %v65 = vsel %vm64, %v44, 0.0
    %v66 = vpack.c.bf16 %v65, %v65
    %v67 = vld [vmem:[%s4] sm:$0xf]
    %v68 = vld [vmem:[%s4 + $0x4] sm:$0xf]
    %v69 = vld [vmem:[%s4 + $0x8] sm:$0xf]
    %v70 = vld [vmem:[%s4 + $0xc] sm:$0xf]
    %v71 = vld [vmem:[%s4 + $0x10] sm:$0xf]
    %v72 = vld [vmem:[%s4 + $0x14] sm:$0xf]
    %v73 = vld [vmem:[%s4 + $0x18] sm:$0xf]
    %v74 = vld [vmem:[%s4 + $0x1c] sm:$0xf]
    %v75 = vld [vmem:[%s4 + $0x20] sm:$0xf]
    %v76 = vld [vmem:[%s4 + $0x24] sm:$0xf]
    %v77 = vld [vmem:[%s4 + $0x28] sm:$0xf]
    %v78 = vld [vmem:[%s4 + $0x2c] sm:$0xf]
    %v79 = vld [vmem:[%s4 + $0x30] sm:$0xf]
    %v80 = vld [vmem:[%s4 + $0x34] sm:$0xf]
    %v81 = vld [vmem:[%s4 + $0x38] sm:$0xf]
    %v82 = vld [vmem:[%s4 + $0x3c] sm:$0xf]
    %v83 = vld [vmem:[%s5] sm:$0x1]
    %v85 = vlaneseq
    %v86 = vshrl.u32 %v85, 7
    %v87 = vsub.s32 0, %v86
    %v88 = vrot.slane %v83, %v87
    %v106 = vunpack.c.l.b16 %v67
    %v107 = vunpack.c.l.b16 %v68
    %v108 = vunpack.c.l.b16 %v69
    %v109 = vunpack.c.l.b16 %v70
    %v110 = vunpack.c.l.b16 %v71
    %v111 = vunpack.c.l.b16 %v72
    %v112 = vunpack.c.l.b16 %v73
    %v113 = vunpack.c.l.b16 %v74
    %v114 = vunpack.c.l.b16 %v75
    %v115 = vunpack.c.l.b16 %v76
    %v116 = vunpack.c.l.b16 %v77
    %v117 = vunpack.c.l.b16 %v78
    %v118 = vunpack.c.l.b16 %v79
    %v119 = vunpack.c.l.b16 %v80
    %v120 = vunpack.c.l.b16 %v81
    %v121 = vunpack.c.l.b16 %v82
    %v122 = vpack.c.b16 %v107, %v106
    %v123 = vpack.c.b16 %v109, %v108
    %v124 = vpack.c.b16 %v111, %v110
    %v125 = vpack.c.b16 %v113, %v112
    %v126 = vpack.c.b16 %v115, %v114
    %v127 = vpack.c.b16 %v117, %v116
    %v128 = vpack.c.b16 %v119, %v118
    %v129 = vpack.c.b16 %v121, %v120
    %138 = vmatprep.subr.bf16.mxu0 0
    %139 = vmatpush1.bf16.msra.mxu0 %v129
    %140 = vmatprep.subr.bf16.mxu0 0
    %141 = vmatpush1.bf16.msra.mxu0 %v128
    %142 = vmatprep.subr.bf16.mxu0 0
    %143 = vmatpush1.bf16.msra.mxu0 %v127
    %144 = vmatprep.subr.bf16.mxu0 0
    %145 = vmatpush1.bf16.msra.mxu0 %v126
    %146 = vmatprep.subr.bf16.mxu0 0
    %147 = vmatpush1.bf16.msra.mxu0 %v125
    %148 = vmatprep.subr.bf16.mxu0 0
    %149 = vmatpush1.bf16.msra.mxu0 %v124
    %150 = vmatprep.subr.bf16.mxu0 0
    %151 = vmatpush1.bf16.msra.mxu0 %v123
    %152 = vmatprep.subr.bf16.mxu0 0
    %153 = vmatpush1.bf16.msra.mxu0 %v122
    %154 = vmatprep.subr.bf16.mxu0 0
    %155 = vmatpush2.bf16.msra.mxu0 0
    %156 = vmatprep.subr.bf16.mxu0 0
    %157 = vmatpush2.bf16.msra.mxu0 0
    %158 = vmatprep.subr.bf16.mxu0 0
    %159 = vmatpush2.bf16.msra.mxu0 0
    %160 = vmatprep.subr.bf16.mxu0 0
    %161 = vmatpush2.bf16.msra.mxu0 0
    %162 = vmatprep.subr.bf16.mxu0 0
    %163 = vmatpush2.bf16.msra.mxu0 0
    %164 = vmatprep.subr.bf16.mxu0 0
    %165 = vmatpush2.bf16.msra.mxu0 0
    %166 = vmatprep.subr.bf16.mxu0 0
    %167 = vmatpush2.bf16.msra.mxu0 0
    %168 = vmatprep.subr.bf16.mxu0 0
    %169 = vmatpush2.bf16.msra.mxu0 0
    %170 = vmatprep.mubr.bf16.mxu0 0
    %171 = vmatmul.mubr.bf16.gmra.mxu0 %v66
    %v172 = vpop.f32.mrf.mxu0
    %v173 = vadd.f32 %v88, %v172
    %v174 = vpop.f32.mrf.mxu0
    %v175 = vpop.f32.mrf.mxu0
    %v176 = vpop.f32.mrf.mxu0
    %177 = vdwg.mxu0
    %vm178 = vcmask 80896
    %179 = vst.msk [vmem:[#allocation4] sm:$0xff] %vm178, %v173
    // Predicated region
    $region22: #{ori_dnn_forward.5} parent=1 // pred_check
      _
    $region23: #{ori_dnn_forward.5} parent=1 // pred_check_branch
      %181 = sbr.rel (0) target = $region25
    $region24: #{ori_dnn_forward.5} parent=1 // pred_region
      %s183 = ssub.s32 128, 128
      %184 = vsyncadd [#allocation5], %s183
      %s186 = sshll.u32 [#allocation4], 4
      %s187 = int_to_ptr.vmem [resolvable:$true] %s186
      %189 = dma.vmem_to_hbm [thread:$0]  %s187, 128, %s6, [#allocation5]
    $region25: #{ori_dnn_forward.5} parent=1 // pred_fallthru
      _
    // Predicated region
    $region26: #{ori_dnn_forward.5} parent=1 // pred_check
      _
    $region27: #{ori_dnn_forward.5} parent=1 // pred_check_branch
      %191 = sbr.rel (0) target = $region29
    $region28: #{ori_dnn_forward.5} parent=1 // pred_region
      %192 = dma.done [#allocation5], 128
    $region29: #{ori_dnn_forward.5} parent=1 // pred_fallthru
      _
    %193 = vsyncpa [#allocation5], 1

// kernel: ori_dnn_forward.4
$region0: #{ori_dnn_forward.4}
  #allocation0 [shape = 'u32[]', space=smem, size = 0x4, offset = 0x4, fixed_abs, tag = 'smem constant byte address 0x4 - core index']
  #allocation1 [shape = 'u32[144,128]{1,0:T(1,128)}', space=vmem, size = 0x12000, scoped, tag = 'internal scratch']
  #allocation2 [shape = 's32[1]{0}', space=sflag, size = 0x4, scoped, tag = 'scoped memory for ori_dnn_forward.4']
  #allocation3 [shape = 's32[1]{0:T(128)S(6)}', space=smem, size = 0x200, scoped, tag = 'prefetched SMEM operand 0']
  %s0 = inlined_call_operand.<no memory space> [shape: s32[1], index: 0, kind: input, shape index: {}]
  %s1 = inlined_call_operand.vmem [shape: f32[8,128], index: 1, kind: input, shape index: {}]
  %s2 = inlined_call_operand.vmem [shape: f32[1,128], index: 2, kind: input, shape index: {}]
  %s3 = inlined_call_operand.vmem [shape: f32[1,128], index: 3, kind: input, shape index: {}]
  %s4 = inlined_call_operand.vmem [shape: bf16[128,128], index: 4, kind: input, shape index: {}]
  %s5 = inlined_call_operand.vmem [shape: f32[8,128], index: 5, kind: output, shape index: {0}]
  %s6 = inlined_call_operand.vmem [shape: f32[1,8,128], index: 6, kind: output, shape index: {1}]
  %7 = xla_tuple %s5, %s6
  %s8 = sld [smem:[#allocation0]]
  $region34: #{ori_dnn_forward.4} parent=0
    _
  %s10 = ssub.s32 1, %s8
  %s11 = scalar_select 0, %s10, %s8
  %12 = sst [smem:[#allocation3]] %s0
  // Predicated region
  $region2: #{ori_dnn_forward.4} parent=0 // pred_check
    _
  $region3: #{ori_dnn_forward.4} parent=0 // pred_check_branch
    %14 = sbr.rel (0) target = $region5
  $region4: #{ori_dnn_forward.4} parent=0 // pred_region
    _
  $region5: #{ori_dnn_forward.4} parent=0 // pred_fallthru
    _
  // Predicated region
  $region6: #{ori_dnn_forward.4} parent=0 // pred_check
    _
  $region7: #{ori_dnn_forward.4} parent=0 // pred_check_branch
    %16 = sbr.rel (0) target = $region9
  $region8: #{ori_dnn_forward.4} parent=0 // pred_region
    _
  $region9: #{ori_dnn_forward.4} parent=0 // pred_fallthru
    _
  // Predicated region
  $region10: #{ori_dnn_forward.4} parent=0 // pred_check
    _
  $region11: #{ori_dnn_forward.4} parent=0 // pred_check_branch
    %18 = sbr.rel (0) target = $region13
  $region12: #{ori_dnn_forward.4} parent=0 // pred_region
    _
  $region13: #{ori_dnn_forward.4} parent=0 // pred_fallthru
    _
  // Predicated region
  $region14: #{ori_dnn_forward.4} parent=0 // pred_check
    _
  $region15: #{ori_dnn_forward.4} parent=0 // pred_check_branch
    %20 = sbr.rel (0) target = $region17
  $region16: #{ori_dnn_forward.4} parent=0 // pred_region
    _
  $region17: #{ori_dnn_forward.4} parent=0 // pred_fallthru
    _
  %s22 = sld [smem:[#allocation3]]
  %s23 = sxor.u32 %s22, 1663821211
  %s24 = smul.u32 0, 8
  %v25 = vld [vmem:[%s1] sm:$0xff]
  %v26 = vld [vmem:[%s2] sm:$0x1]
  %v27 = vld [vmem:[%s3] sm:$0x1]
  %v29 = vlaneseq
  %v30 = vshrl.u32 %v29, 7
  %v31 = vsub.s32 0, %v30
  %v32 = vrot.slane %v26, %v31
  %v34 = vmul.f32 %v25, %v32
  %v36 = vlaneseq
  %v37 = vshrl.u32 %v36, 7
  %v38 = vsub.s32 0, %v37
  %v39 = vrot.slane %v27, %v38
  %v41 = vadd.f32 %v34, %v39
  %v42 = vmax.f32 %v41, 0.0
  %v43 = vlaneseq
  %v44 = vshrl.u32 %v43, 7
  %v45 = vstv %s24
  %v46 = vadd.s32 %v44, %v45
  %v47 = vlaneseq
  %v48 = vand.u32 %v47, 127
  %v49 = vmul.u32 %v46, 2654435761
  %v50 = vmul.u32 %v48, 2246822519
  %v51 = vxor.u32 %v49, %v50
  %v52 = vstv %s23
  %v53 = vxor.u32 %v51, %v52
  %v54 = vshrl.u32 %v53, 16
  %v55 = vxor.u32 %v53, %v54
  %v56 = vmul.u32 %v55, 2146121005
  %v57 = vshrl.u32 %v56, 15
  %v58 = vxor.u32 %v56, %v57
  %v59 = vmul.u32 %v58, 2221713035
  %v60 = vshrl.u32 %v59, 16
  %v61 = vxor.u32 %v59, %v60
  %vm62 = vcmp.ge.u32.totalorder %v61, 1288490188
  %v63 = vsel %vm62, %v42, 0.0
  %v64 = vpack.c.bf16 %v63, %v63
  %v65 = vld [vmem:[%s4] sm:$0xf]
  %v66 = vld [vmem:[%s4 + $0x4] sm:$0xf]
  %v67 = vld [vmem:[%s4 + $0x8] sm:$0xf]
  %v68 = vld [vmem:[%s4 + $0xc] sm:$0xf]
  %v69 = vld [vmem:[%s4 + $0x10] sm:$0xf]
  %v70 = vld [vmem:[%s4 + $0x14] sm:$0xf]
  %v71 = vld [vmem:[%s4 + $0x18] sm:$0xf]
  %v72 = vld [vmem:[%s4 + $0x1c] sm:$0xf]
  %v73 = vld [vmem:[%s4 + $0x20] sm:$0xf]
  %v74 = vld [vmem:[%s4 + $0x24] sm:$0xf]
  %v75 = vld [vmem:[%s4 + $0x28] sm:$0xf]
  %v76 = vld [vmem:[%s4 + $0x2c] sm:$0xf]
  %v77 = vld [vmem:[%s4 + $0x30] sm:$0xf]
  %v78 = vld [vmem:[%s4 + $0x34] sm:$0xf]
  %v79 = vld [vmem:[%s4 + $0x38] sm:$0xf]
  %v80 = vld [vmem:[%s4 + $0x3c] sm:$0xf]
  %v97 = vunpack.c.l.b16 %v65
  %v98 = vunpack.c.l.b16 %v66
  %v99 = vunpack.c.l.b16 %v67
  %v100 = vunpack.c.l.b16 %v68
  %v101 = vunpack.c.l.b16 %v69
  %v102 = vunpack.c.l.b16 %v70
  %v103 = vunpack.c.l.b16 %v71
  %v104 = vunpack.c.l.b16 %v72
  %v105 = vunpack.c.l.b16 %v73
  %v106 = vunpack.c.l.b16 %v74
  %v107 = vunpack.c.l.b16 %v75
  %v108 = vunpack.c.l.b16 %v76
  %v109 = vunpack.c.l.b16 %v77
  %v110 = vunpack.c.l.b16 %v78
  %v111 = vunpack.c.l.b16 %v79
  %v112 = vunpack.c.l.b16 %v80
  %v113 = vpack.c.b16 %v98, %v97
  %v114 = vpack.c.b16 %v100, %v99
  %v115 = vpack.c.b16 %v102, %v101
  %v116 = vpack.c.b16 %v104, %v103
  %v117 = vpack.c.b16 %v106, %v105
  %v118 = vpack.c.b16 %v108, %v107
  %v119 = vpack.c.b16 %v110, %v109
  %v120 = vpack.c.b16 %v112, %v111
  %129 = vmatprep.subr.bf16.mxu0 0
  %130 = vmatpush1.bf16.msra.mxu0 %v120
  %131 = vmatprep.subr.bf16.mxu0 0
  %132 = vmatpush1.bf16.msra.mxu0 %v119
  %133 = vmatprep.subr.bf16.mxu0 0
  %134 = vmatpush1.bf16.msra.mxu0 %v118
  %135 = vmatprep.subr.bf16.mxu0 0
  %136 = vmatpush1.bf16.msra.mxu0 %v117
  %137 = vmatprep.subr.bf16.mxu0 0
  %138 = vmatpush1.bf16.msra.mxu0 %v116
  %139 = vmatprep.subr.bf16.mxu0 0
  %140 = vmatpush1.bf16.msra.mxu0 %v115
  %141 = vmatprep.subr.bf16.mxu0 0
  %142 = vmatpush1.bf16.msra.mxu0 %v114
  %143 = vmatprep.subr.bf16.mxu0 0
  %144 = vmatpush1.bf16.msra.mxu0 %v113
  %145 = vmatprep.subr.bf16.mxu0 0
  %146 = vmatpush2.bf16.msra.mxu0 0
  %147 = vmatprep.subr.bf16.mxu0 0
  %148 = vmatpush2.bf16.msra.mxu0 0
  %149 = vmatprep.subr.bf16.mxu0 0
  %150 = vmatpush2.bf16.msra.mxu0 0
  %151 = vmatprep.subr.bf16.mxu0 0
  %152 = vmatpush2.bf16.msra.mxu0 0
  %153 = vmatprep.subr.bf16.mxu0 0
  %154 = vmatpush2.bf16.msra.mxu0 0
  %155 = vmatprep.subr.bf16.mxu0 0
  %156 = vmatpush2.bf16.msra.mxu0 0
  %157 = vmatprep.subr.bf16.mxu0 0
  %158 = vmatpush2.bf16.msra.mxu0 0
  %159 = vmatprep.subr.bf16.mxu0 0
  %160 = vmatpush2.bf16.msra.mxu0 0
  %161 = vmatprep.mubr.bf16.mxu0 0
  %162 = vmatmul.mubr.bf16.gmra.mxu0 %v64
  %v163 = vpop.f32.mrf.mxu0
  %v164 = vadd.f32 0.0, %v163
  %v165 = vpop.f32.mrf.mxu0
  %v166 = vpop.f32.mrf.mxu0
  %v167 = vpop.f32.mrf.mxu0
  %168 = vdwg.mxu0
  %169 = vst [vmem:[%s5] sm:$0xff] %v164
  %v170 = vrot.slane %v164, 4
  %v171 = vadd.f32 %v164, %v170
  %v172 = vrot.slane %v171, 2
  %v173 = vadd.f32 %v171, %v172
  %v174 = vrot.slane %v173, 1
  %v175 = vadd.f32 %v173, %v174
  %v176 = vmul.f32 %v164, %v164
  %v177 = vrot.slane %v176, 4
  %v178 = vadd.f32 %v176, %v177
  %v179 = vrot.slane %v178, 2
  %v180 = vadd.f32 %v178, %v179
  %v181 = vrot.slane %v180, 1
  %v182 = vadd.f32 %v180, %v181
  %vm183 = vcmp.eq.s32.totalorder %v44, 0
  %vm184 = vcmp.eq.s32.totalorder %v44, 1
  %v185 = vsel %vm184, %v182, 0.0
  %v186 = vsel %vm183, %v175, %v185
  %187 = vst [vmem:[%s6] sm:$0xff] %v186
  // Predicated region
  $region18: #{ori_dnn_forward.4} parent=0 // pred_check
    _
  $region19: #{ori_dnn_forward.4} parent=0 // pred_check_branch
    %189 = sbr.rel (0) target = $region21
  $region20: #{ori_dnn_forward.4} parent=0 // pred_region
    _
  $region21: #{ori_dnn_forward.4} parent=0 // pred_fallthru
    _
  // Predicated region
  $region22: #{ori_dnn_forward.4} parent=0 // pred_check
    _
  $region23: #{ori_dnn_forward.4} parent=0 // pred_check_branch
    %191 = sbr.rel (0) target = $region25
  $region24: #{ori_dnn_forward.4} parent=0 // pred_region
    _
  $region25: #{ori_dnn_forward.4} parent=0 // pred_fallthru
    _
  // Predicated region
  $region26: #{ori_dnn_forward.4} parent=0 // pred_check
    _
  $region27: #{ori_dnn_forward.4} parent=0 // pred_check_branch
    %193 = sbr.rel (0) target = $region29
  $region28: #{ori_dnn_forward.4} parent=0 // pred_region
    _
  $region29: #{ori_dnn_forward.4} parent=0 // pred_fallthru
    _
  // Predicated region
  $region30: #{ori_dnn_forward.4} parent=0 // pred_check
    _
  $region31: #{ori_dnn_forward.4} parent=0 // pred_check_branch
    %195 = sbr.rel (0) target = $region33
  $region32: #{ori_dnn_forward.4} parent=0 // pred_region
    _
  $region33: #{ori_dnn_forward.4} parent=0 // pred_fallthru
    _

</llo_original>
